<compile_context>
chip_gen: v7x
topology: tpu7x:2x2x1
jax: 0.10.0
libtpu: 0.0.40
codegen_flags: <defaults>
</compile_context>

<pallas_src>
import collections
import math as pymath

import jax
import jax.numpy as jnp
from jax.experimental import pallas as pl
from jax.experimental.pallas import tpu as pltpu

_EPS = 1e-16                      # safe_log epsilon
_DUMMY = -2.0 * 2.30258           # matches the PyTorch constant (-2.0 * 2.30258)
_HALF_LOG_2PI = 0.5 * pymath.log(2.0 * pymath.pi)

CapsuleLikelihoodTuple = collections.namedtuple(
    "CapsuleLikelihoodTuple",
    "log_prob vote_presence winner winner_pres is_from_capsule mixing_logits "
    "mixing_log_prob soft_winner soft_winner_pres posterior_mixing_probs")


def capsule_likelihood_kernel(x_ref, votes_ref, scales_ref, pres_ref, dummy_ref,
                              lp_ref, votepres_ref, winner_ref, winnerpres_ref,
                              isfrom_ref, mixlog_ref, mixlp_ref, softwin_ref,
                              softwinpres_ref, postmix_ref):
    # Lane layout: lane = (example-in-block)*P + point, L = BB*P.
    #   x      [1, D, L]        votes  [1, D*K, L]   (row = d*K + k, contiguous per d)
    #   scales [1, K, L]        pres   [1, K, L]     dummy [D, L]
    f32 = jnp.float32
    scales = scales_ref[0]                               # [K, L]
    pres = pres_ref[0]                                   # [K, L]
    K, L = scales.shape
    D = x_ref.shape[1]

    # --- Gaussian log-prob summed over the pose dim, accumulated over D so the
    #     live set stays ~[K, L] (no [K, D, L] temporaries -> no vreg spills).
    ssq = jnp.zeros((K, L), f32)
    for d in range(D):
        xd = x_ref[0, d, :]                              # [L]
        vd = votes_ref[0, d * K:(d + 1) * K, :]          # [K, L] contiguous slice
        diff = vd - xd[None, :]
        ssq = ssq + diff * diff
    vote_log_prob = (-0.5 * ssq / (scales * scales)
                     - D * jnp.log(scales) - D * _HALF_LOG_2PI)       # [K, L]

    # --- mixing logits; the dummy row is the constant _DUMMY and is folded
    #     into the logsumexp analytically (no concatenates).
    mixing_logits = jnp.log(jnp.maximum(pres, _EPS))                   # [K, L]
    m1 = jnp.maximum(jnp.max(mixing_logits, axis=0, keepdims=True), _DUMMY)
    s1 = (jnp.sum(jnp.exp(mixing_logits - m1), axis=0, keepdims=True)
          + jnp.exp(_DUMMY - m1))
    lse_mix = jnp.log(s1) + m1                                         # [1, L]

    # --- fused mixture logsumexp + posterior softmax over capsules (+ dummy).
    post = mixing_logits + vote_log_prob                               # [K, L]
    max_post = jnp.max(post, axis=0, keepdims=True)                    # [1, L]
    m2 = jnp.maximum(max_post, 2.0 * _DUMMY)
    e = jnp.exp(post - m2)                                             # [K, L]
    e_dummy = jnp.exp(2.0 * _DUMMY - m2)                               # [1, L]
    denom = jnp.sum(e, axis=0, keepdims=True) + e_dummy                # [1, L]
    mixture_lp = jnp.log(denom) + m2                                   # [1, L]
    inv_denom = 1.0 / denom                                            # exact softmax
    probs = e * inv_denom                                              # [K, L]
    probs_dummy = (e_dummy * inv_denom)[0]                             # [L]

    lp_ref[0] = mixture_lp           # per-point log prob; reduced in the wrapper

    # --- argmax over real capsules (first-max tie-break, int32 index math).
    iota_k = jax.lax.broadcasted_iota(jnp.int32, post.shape, 0)        # [K, L]
    cand = jnp.where(post >= max_post, iota_k, K)
    win_idx = jnp.min(cand, axis=0, keepdims=True)                     # [1, L]
    onehot = (iota_k == win_idx).astype(f32)                           # [K, L]

    # --- winner / soft-winner: per pose dim, two small K-axis reductions on a
    #     contiguous [K, L] vote slice (no stacked [2, K, D, L] temporary).
    for d in range(D):
        vd = votes_ref[0, d * K:(d + 1) * K, :]                        # [K, L]
        winner_ref[0, d, :] = jnp.sum(onehot * vd, axis=0)
        softwin_ref[0, d, :] = (jnp.sum(probs * vd, axis=0)
                                + probs_dummy * dummy_ref[d, :])

    winnerpres_ref[0] = jnp.sum(onehot * pres, axis=0, keepdims=True)      # [1, L]
    softwinpres_ref[0] = jnp.sum(probs * pres, axis=0, keepdims=True)      # dummy pres = 0
    votepres_ref[0] = (mixing_logits > _DUMMY).astype(f32)                 # [K, L]
    isfrom_ref[0] = win_idx        # is_from_capsule = idx // n_votes, n_votes == 1
    postmix_ref[0] = probs

    # mixing logits / log-probs: capsule rows + constant dummy row (no concat).
    mixlog_ref[0, :K] = mixing_logits
    mixlog_ref[0, K] = jnp.full_like(lse_mix[0], _DUMMY)
    mixlp_ref[0, :K] = mixing_logits - lse_mix
    mixlp_ref[0, K] = _DUMMY - lse_mix[0]


def capsule_likelihood(x, votes, scales, vote_presence_prob, dummy_vote,
                       presence=None, *, block_b=None):
    """JAX/Pallas port of CapsuleLikelihood.forward (presence=None path)."""
    # TODO(synk): `presence is not None` masking path not wired into the kernel;
    # the default forward() path (presence=None) is implemented.
    assert presence is None
    B, P, D = x.shape
    K = votes.shape[1]
    f32 = jnp.float32

    if block_b is None:
        if B >= 128:
            # >= 2 blocks so the parallel grid shards across both TensorCores
            # on v7x; cap at 512 examples/block so double-buffered in+out
            # blocks stay well inside the default scoped VMEM even on v5e.
            half = -(-B // 2)
            block_b = min(512, -(-half // 8) * 8)
        else:
            block_b = B
    BB = max(1, int(block_b))
    nb = pl.cdiv(B, BB)
    Bp = nb * BB
    L = BB * P

    x = x.astype(f32)
    votes = votes.astype(f32)
    scales = scales.astype(f32)
    pres = vote_presence_prob.astype(f32)

    if Bp != B:  # pad the batch so it splits evenly into blocks
        pad = Bp - B
        x = jnp.pad(x, ((0, pad), (0, 0), (0, 0)))
        votes = jnp.pad(votes, ((0, pad), (0, 0), (0, 0), (0, 0)))
        scales = jnp.pad(scales, ((0, pad), (0, 0), (0, 0)), constant_values=1.0)
        pres = jnp.pad(pres, ((0, pad), (0, 0), (0, 0)), constant_values=0.5)

    # --- wrapper relayouts into the lane-dense (lane = b*P + p) layout. These
    #     are the remaining XLA transposes; downstream consumers that can take
    #     lane-major outputs directly should skip the inverse relayouts below.
    x_l = jnp.transpose(x.reshape(nb, BB, P, D), (0, 3, 1, 2)).reshape(nb, D, L)
    votes_l = jnp.transpose(votes.reshape(nb, BB, K, P, D),
                            (0, 4, 2, 1, 3)).reshape(nb, D * K, L)
    scales_l = jnp.transpose(scales.reshape(nb, BB, K, P),
                             (0, 2, 1, 3)).reshape(nb, K, L)
    pres_l = jnp.transpose(pres.reshape(nb, BB, K, P),
                           (0, 2, 1, 3)).reshape(nb, K, L)
    dummy_dp = jnp.transpose(dummy_vote.astype(f32).reshape(P, D))      # [D, P]
    dummy_l = jnp.tile(dummy_dp, (1, BB))                               # [D, L]

    out_shape = (
        jax.ShapeDtypeStruct((nb, 1, L), f32),          # per-point mixture log prob
        jax.ShapeDtypeStruct((nb, K, L), f32),          # vote_presence
        jax.ShapeDtypeStruct((nb, D, L), f32),          # winner
        jax.ShapeDtypeStruct((nb, 1, L), f32),          # winner_pres
        jax.ShapeDtypeStruct((nb, 1, L), jnp.int32),    # is_from_capsule
        jax.ShapeDtypeStruct((nb, K + 1, L), f32),      # mixing_logits
        jax.ShapeDtypeStruct((nb, K + 1, L), f32),      # mixing_log_prob
        jax.ShapeDtypeStruct((nb, D, L), f32),          # soft_winner
        jax.ShapeDtypeStruct((nb, 1, L), f32),          # soft_winner_pres
        jax.ShapeDtypeStruct((nb, K, L), f32),          # posterior probs
    )
    in_specs = [
        pl.BlockSpec((1, D, L), lambda b: (b, 0, 0)),
        pl.BlockSpec((1, D * K, L), lambda b: (b, 0, 0)),
        pl.BlockSpec((1, K, L), lambda b: (b, 0, 0)),
        pl.BlockSpec((1, K, L), lambda b: (b, 0, 0)),
        pl.BlockSpec((D, L), lambda b: (0, 0)),          # shared dummy vote
    ]
    out_specs = (
        pl.BlockSpec((1, 1, L), lambda b: (b, 0, 0)),
        pl.BlockSpec((1, K, L), lambda b: (b, 0, 0)),
        pl.BlockSpec((1, D, L), lambda b: (b, 0, 0)),
        pl.BlockSpec((1, 1, L), lambda b: (b, 0, 0)),
        pl.BlockSpec((1, 1, L), lambda b: (b, 0, 0)),
        pl.BlockSpec((1, K + 1, L), lambda b: (b, 0, 0)),
        pl.BlockSpec((1, K + 1, L), lambda b: (b, 0, 0)),
        pl.BlockSpec((1, D, L), lambda b: (b, 0, 0)),
        pl.BlockSpec((1, 1, L), lambda b: (b, 0, 0)),
        pl.BlockSpec((1, K, L), lambda b: (b, 0, 0)),
    )
    outs = pl.pallas_call(
        capsule_likelihood_kernel,
        out_shape=out_shape,
        grid=(nb,),
        in_specs=in_specs,
        out_specs=out_specs,
        compiler_params=pltpu.CompilerParams(
            dimension_semantics=("parallel",)),
    )(x_l, votes_l, scales_l, pres_l, dummy_l)

    (lp, vote_presence, winner, winner_pres, is_from, mixing_logits,
     mixing_log_prob, soft_winner, soft_winner_pres, posterior_probs) = outs

    def split_lanes(a):
        # [nb, A, L] -> [Bp, A, P]
        A = a.shape[1]
        a = a.reshape(nb, A, BB, P)
        return jnp.transpose(a, (0, 2, 1, 3)).reshape(Bp, A, P)

    lp_point = split_lanes(lp)[:B, 0, :]                               # [B, P]
    log_prob = jnp.mean(jnp.sum(lp_point, axis=-1))                    # scalar
    vote_presence = split_lanes(vote_presence)[:B]                     # [B, K, P]
    winner = jnp.transpose(split_lanes(winner)[:B], (0, 2, 1))         # [B, P, D]
    # PyTorch's advanced-indexing quirk returns winning_pres with shape [P, B].
    winner_pres_out = jnp.transpose(split_lanes(winner_pres)[:B, 0, :])    # [P, B]
    is_from_capsule = split_lanes(is_from)[:B, 0, :]                   # [B, P]
    mixing_logits = split_lanes(mixing_logits)[:B]                     # [B, K+1, P]
    mixing_log_prob = split_lanes(mixing_log_prob)[:B]                 # [B, K+1, P]
    soft_winner = jnp.transpose(split_lanes(soft_winner)[:B], (0, 2, 1))   # [B, P, D]
    soft_winner_pres = split_lanes(soft_winner_pres)[:B, 0, :]         # [B, P]
    posterior_mixing_probs = jnp.transpose(split_lanes(posterior_probs)[:B],
                                           (0, 2, 1))                  # [B, P, K]

    return CapsuleLikelihoodTuple(
        log_prob=log_prob,
        vote_presence=vote_presence,
        winner=winner,
        winner_pres=winner_pres_out,
        is_from_capsule=is_from_capsule,
        mixing_logits=mixing_logits,
        mixing_log_prob=mixing_log_prob,
        soft_winner=soft_winner,
        soft_winner_pres=soft_winner_pres,
        posterior_mixing_probs=posterior_mixing_probs,
    )


def _reference(x, votes, scales, pres, dummy_vote):
    """Pure-JAX reference for the default (presence=None) forward path."""
    B, P, D = x.shape
    K = votes.shape[1]
    diff = x[:, None] - votes                                          # [B, K, P, D]
    ssq = jnp.sum(diff * diff, axis=-1)                                # [B, K, P]
    vlp = (-0.5 * ssq / (scales ** 2) - D * jnp.log(scales)
           - D * 0.5 * jnp.log(2.0 * jnp.pi))
    vlp_full = jnp.concatenate([vlp, jnp.full((B, 1, P), _DUMMY)], axis=1)
    ml = jnp.log(jnp.maximum(pres, _EPS))
    ml_full = jnp.concatenate([ml, jnp.full((B, 1, P), _DUMMY)], axis=1)
    mlp = ml_full - jax.scipy.special.logsumexp(ml_full, axis=1, keepdims=True)
    post = ml_full + vlp_full                                          # [B, K+1, P]
    log_prob = jnp.mean(jnp.sum(
        jax.scipy.special.logsumexp(post, axis=1), axis=1))
    win_idx = jnp.argmax(post[:, :K], axis=1)                          # [B, P]
    winner = jnp.take_along_axis(votes, win_idx[:, None, :, None], axis=1)[:, 0]
    probs_full = jax.nn.softmax(post, axis=1)                          # [B, K+1, P]
    dummy_votes = jnp.broadcast_to(dummy_vote.reshape(1, 1, P, D), (B, 1, P, D))
    votes_full = jnp.concatenate([votes, dummy_votes], axis=1)
    soft_winner = jnp.sum(probs_full[..., None] * votes_full, axis=1)  # [B, P, D]
    post_probs = jnp.transpose(probs_full[:, :K], (0, 2, 1))           # [B, P, K]
    return log_prob, winner, soft_winner, post_probs, mlp


if __name__ == "__main__":
    key = jax.random.PRNGKey(0)
    B, K, P, D = 2, 4, 16, 6
    k1, k2, k3, k4, k5 = jax.random.split(key, 5)

    # Deterministic synthetic "parameters" (module stores votes/scales/presence).
    x = jax.random.normal(k1, (B, P, D), jnp.float32)
    votes = jax.random.normal(k2, (B, K, P, D), jnp.float32)
    scales = jax.nn.softplus(jax.random.normal(k3, (B, K, P), jnp.float32)) + 0.1
    vote_presence_prob = jax.nn.sigmoid(
        jax.random.normal(k4, (B, K, P), jnp.float32))
    # PyTorch draws dummy_vote with nn.init.uniform_ each forward; deterministic here.
    dummy_vote = jax.random.uniform(k5, (1, P, D), jnp.float32)

    out = capsule_likelihood(x, votes, scales, vote_presence_prob, dummy_vote)
    jax.block_until_ready(out)

    assert out.winner.shape == x.shape
    assert out.soft_winner.shape == x.shape
    assert out.posterior_mixing_probs.shape == (B, P, K)
    assert out.mixing_logits.shape == (B, K + 1, P)
    assert out.winner_pres.shape == (P, B)
    assert out.is_from_capsule.shape == (B, P)

    ref_lp, ref_winner, ref_soft, ref_pp, ref_mlp = _reference(
        x, votes, scales, vote_presence_prob, dummy_vote)
    assert bool(jnp.allclose(out.log_prob, ref_lp, rtol=1e-4, atol=1e-4))
    assert bool(jnp.allclose(out.winner, ref_winner, rtol=1e-4, atol=1e-4))
    assert bool(jnp.allclose(out.soft_winner, ref_soft, rtol=1e-3, atol=1e-3))
    assert bool(jnp.allclose(out.posterior_mixing_probs, ref_pp, rtol=1e-3, atol=1e-3))
    assert bool(jnp.allclose(out.mixing_log_prob, ref_mlp, rtol=1e-4, atol=1e-4))
    print("KERNEL_OK")
</pallas_src>

<mosaic_0001>
module attributes {stable_mosaic.version = 11 : i64} {
  func.func @capsule_likelihood_kernel(%arg0: i32, %arg1: memref<1x6x32xf32, #tpu.memory_space<vmem>>, %arg2: memref<1x24x32xf32, #tpu.memory_space<vmem>>, %arg3: memref<1x4x32xf32, #tpu.memory_space<vmem>>, %arg4: memref<1x4x32xf32, #tpu.memory_space<vmem>>, %arg5: memref<6x32xf32, #tpu.memory_space<vmem>>, %arg6: memref<1x1x32xf32, #tpu.memory_space<vmem>>, %arg7: memref<1x4x32xf32, #tpu.memory_space<vmem>>, %arg8: memref<1x6x32xf32, #tpu.memory_space<vmem>>, %arg9: memref<1x1x32xf32, #tpu.memory_space<vmem>>, %arg10: memref<1x1x32xi32, #tpu.memory_space<vmem>>, %arg11: memref<1x5x32xf32, #tpu.memory_space<vmem>>, %arg12: memref<1x5x32xf32, #tpu.memory_space<vmem>>, %arg13: memref<1x6x32xf32, #tpu.memory_space<vmem>>, %arg14: memref<1x1x32xf32, #tpu.memory_space<vmem>>, %arg15: memref<1x4x32xf32, #tpu.memory_space<vmem>>) attributes {dimension_semantics = [#tpu.dimension_semantics<parallel>], iteration_bounds = array<i64: 1>, scalar_prefetch = 0 : i64, scratch_operands = 0 : i64, tpu.core_type = #tpu.core_type<tc>, window_params = [{transform_indices = @transform_0, window_bounds = array<i64: 1, 6, 32>}, {transform_indices = @transform_1, window_bounds = array<i64: 1, 24, 32>}, {transform_indices = @transform_2, window_bounds = array<i64: 1, 4, 32>}, {transform_indices = @transform_3, window_bounds = array<i64: 1, 4, 32>}, {pipeline_mode = #tpu.pipeline_mode<synchronous>, transform_indices = @transform_4, window_bounds = array<i64: 6, 32>}, {transform_indices = @transform_5, window_bounds = array<i64: 1, 1, 32>}, {transform_indices = @transform_6, window_bounds = array<i64: 1, 4, 32>}, {transform_indices = @transform_7, window_bounds = array<i64: 1, 6, 32>}, {transform_indices = @transform_8, window_bounds = array<i64: 1, 1, 32>}, {transform_indices = @transform_9, window_bounds = array<i64: 1, 1, 32>}, {transform_indices = @transform_10, window_bounds = array<i64: 1, 5, 32>}, {transform_indices = @transform_11, window_bounds = array<i64: 1, 5, 32>}, {transform_indices = @transform_12, window_bounds = array<i64: 1, 6, 32>}, {transform_indices = @transform_13, window_bounds = array<i64: 1, 1, 32>}, {transform_indices = @transform_14, window_bounds = array<i64: 1, 4, 32>}]} {
    %c0 = arith.constant 0 : index
    %c0_0 = arith.constant 0 : index
    %c0_1 = arith.constant 0 : index
    %0 = vector.load %arg3[%c0, %c0_0, %c0_1] : memref<1x4x32xf32, #tpu.memory_space<vmem>>, vector<1x4x32xf32>
    %1 = vector.shape_cast %0 : vector<1x4x32xf32> to vector<4x32xf32>
    %c0_2 = arith.constant 0 : index
    %c0_3 = arith.constant 0 : index
    %c0_4 = arith.constant 0 : index
    %2 = vector.load %arg4[%c0_2, %c0_3, %c0_4] : memref<1x4x32xf32, #tpu.memory_space<vmem>>, vector<1x4x32xf32>
    %3 = vector.shape_cast %2 : vector<1x4x32xf32> to vector<4x32xf32>
    %cst = arith.constant 0.000000e+00 : f32
    %4 = vector.broadcast %cst : f32 to vector<4x32xf32>
    %c0_5 = arith.constant 0 : index
    %c0_6 = arith.constant 0 : index
    %c0_7 = arith.constant 0 : index
    %5 = vector.load %arg1[%c0_5, %c0_6, %c0_7] : memref<1x6x32xf32, #tpu.memory_space<vmem>>, vector<1x1x32xf32>
    %6 = vector.shape_cast %5 : vector<1x1x32xf32> to vector<32xf32>
    %c0_8 = arith.constant 0 : index
    %c0_9 = arith.constant 0 : index
    %c0_10 = arith.constant 0 : index
    %7 = vector.load %arg2[%c0_8, %c0_9, %c0_10] : memref<1x24x32xf32, #tpu.memory_space<vmem>>, vector<1x4x32xf32>
    %8 = vector.shape_cast %7 : vector<1x4x32xf32> to vector<4x32xf32>
    %9 = vector.shape_cast %6 : vector<32xf32> to vector<1x32xf32>
    %10 = vector.broadcast %9 : vector<1x32xf32> to vector<4x32xf32>
    %11 = arith.subf %8, %10 : vector<4x32xf32>
    %12 = arith.mulf %11, %11 : vector<4x32xf32>
    %13 = arith.addf %4, %12 : vector<4x32xf32>
    %c0_11 = arith.constant 0 : index
    %c1 = arith.constant 1 : index
    %c0_12 = arith.constant 0 : index
    %14 = vector.load %arg1[%c0_11, %c1, %c0_12] : memref<1x6x32xf32, #tpu.memory_space<vmem>>, vector<1x1x32xf32>
    %15 = vector.shape_cast %14 : vector<1x1x32xf32> to vector<32xf32>
    %c0_13 = arith.constant 0 : index
    %c4 = arith.constant 4 : index
    %c0_14 = arith.constant 0 : index
    %16 = vector.load %arg2[%c0_13, %c4, %c0_14] : memref<1x24x32xf32, #tpu.memory_space<vmem>>, vector<1x4x32xf32>
    %17 = vector.shape_cast %16 : vector<1x4x32xf32> to vector<4x32xf32>
    %18 = vector.shape_cast %15 : vector<32xf32> to vector<1x32xf32>
    %19 = vector.broadcast %18 : vector<1x32xf32> to vector<4x32xf32>
    %20 = arith.subf %17, %19 : vector<4x32xf32>
    %21 = arith.mulf %20, %20 : vector<4x32xf32>
    %22 = arith.addf %13, %21 : vector<4x32xf32>
    %c0_15 = arith.constant 0 : index
    %c2 = arith.constant 2 : index
    %c0_16 = arith.constant 0 : index
    %23 = vector.load %arg1[%c0_15, %c2, %c0_16] : memref<1x6x32xf32, #tpu.memory_space<vmem>>, vector<1x1x32xf32>
    %24 = vector.shape_cast %23 : vector<1x1x32xf32> to vector<32xf32>
    %c0_17 = arith.constant 0 : index
    %c8 = arith.constant 8 : index
    %c0_18 = arith.constant 0 : index
    %25 = vector.load %arg2[%c0_17, %c8, %c0_18] : memref<1x24x32xf32, #tpu.memory_space<vmem>>, vector<1x4x32xf32>
    %26 = vector.shape_cast %25 : vector<1x4x32xf32> to vector<4x32xf32>
    %27 = vector.shape_cast %24 : vector<32xf32> to vector<1x32xf32>
    %28 = vector.broadcast %27 : vector<1x32xf32> to vector<4x32xf32>
    %29 = arith.subf %26, %28 : vector<4x32xf32>
    %30 = arith.mulf %29, %29 : vector<4x32xf32>
    %31 = arith.addf %22, %30 : vector<4x32xf32>
    %c0_19 = arith.constant 0 : index
    %c3 = arith.constant 3 : index
    %c0_20 = arith.constant 0 : index
    %32 = vector.load %arg1[%c0_19, %c3, %c0_20] : memref<1x6x32xf32, #tpu.memory_space<vmem>>, vector<1x1x32xf32>
    %33 = vector.shape_cast %32 : vector<1x1x32xf32> to vector<32xf32>
    %c0_21 = arith.constant 0 : index
    %c12 = arith.constant 12 : index
    %c0_22 = arith.constant 0 : index
    %34 = vector.load %arg2[%c0_21, %c12, %c0_22] : memref<1x24x32xf32, #tpu.memory_space<vmem>>, vector<1x4x32xf32>
    %35 = vector.shape_cast %34 : vector<1x4x32xf32> to vector<4x32xf32>
    %36 = vector.shape_cast %33 : vector<32xf32> to vector<1x32xf32>
    %37 = vector.broadcast %36 : vector<1x32xf32> to vector<4x32xf32>
    %38 = arith.subf %35, %37 : vector<4x32xf32>
    %39 = arith.mulf %38, %38 : vector<4x32xf32>
    %40 = arith.addf %31, %39 : vector<4x32xf32>
    %c0_23 = arith.constant 0 : index
    %c4_24 = arith.constant 4 : index
    %c0_25 = arith.constant 0 : index
    %41 = vector.load %arg1[%c0_23, %c4_24, %c0_25] : memref<1x6x32xf32, #tpu.memory_space<vmem>>, vector<1x1x32xf32>
    %42 = vector.shape_cast %41 : vector<1x1x32xf32> to vector<32xf32>
    %c0_26 = arith.constant 0 : index
    %c16 = arith.constant 16 : index
    %c0_27 = arith.constant 0 : index
    %43 = vector.load %arg2[%c0_26, %c16, %c0_27] : memref<1x24x32xf32, #tpu.memory_space<vmem>>, vector<1x4x32xf32>
    %44 = vector.shape_cast %43 : vector<1x4x32xf32> to vector<4x32xf32>
    %45 = vector.shape_cast %42 : vector<32xf32> to vector<1x32xf32>
    %46 = vector.broadcast %45 : vector<1x32xf32> to vector<4x32xf32>
    %47 = arith.subf %44, %46 : vector<4x32xf32>
    %48 = arith.mulf %47, %47 : vector<4x32xf32>
    %49 = arith.addf %40, %48 : vector<4x32xf32>
    %c0_28 = arith.constant 0 : index
    %c5 = arith.constant 5 : index
    %c0_29 = arith.constant 0 : index
    %50 = vector.load %arg1[%c0_28, %c5, %c0_29] : memref<1x6x32xf32, #tpu.memory_space<vmem>>, vector<1x1x32xf32>
    %51 = vector.shape_cast %50 : vector<1x1x32xf32> to vector<32xf32>
    %c0_30 = arith.constant 0 : index
    %c20 = arith.constant 20 : index
    %c0_31 = arith.constant 0 : index
    %52 = vector.load %arg2[%c0_30, %c20, %c0_31] : memref<1x24x32xf32, #tpu.memory_space<vmem>>, vector<1x4x32xf32>
    %53 = vector.shape_cast %52 : vector<1x4x32xf32> to vector<4x32xf32>
    %54 = vector.shape_cast %51 : vector<32xf32> to vector<1x32xf32>
    %55 = vector.broadcast %54 : vector<1x32xf32> to vector<4x32xf32>
    %56 = arith.subf %53, %55 : vector<4x32xf32>
    %57 = arith.mulf %56, %56 : vector<4x32xf32>
    %58 = arith.addf %49, %57 : vector<4x32xf32>
    %cst_32 = arith.constant -5.000000e-01 : f32
    %59 = vector.broadcast %cst_32 : f32 to vector<4x32xf32>
    %60 = arith.mulf %59, %58 : vector<4x32xf32>
    %61 = arith.mulf %1, %1 : vector<4x32xf32>
    %62 = arith.divf %60, %61 : vector<4x32xf32>
    %63 = math.log %1 : vector<4x32xf32>
    %cst_33 = arith.constant 6.000000e+00 : f32
    %64 = vector.broadcast %cst_33 : f32 to vector<4x32xf32>
    %65 = arith.mulf %64, %63 : vector<4x32xf32>
    %66 = arith.subf %62, %65 : vector<4x32xf32>
    %cst_34 = arith.constant 5.51363134 : f32
    %67 = vector.broadcast %cst_34 : f32 to vector<4x32xf32>
    %68 = arith.subf %66, %67 : vector<4x32xf32>
    %cst_35 = arith.constant 1.000000e-16 : f32
    %69 = vector.broadcast %cst_35 : f32 to vector<4x32xf32>
    %70 = arith.maximumf %3, %69 : vector<4x32xf32>
    %71 = math.log %70 : vector<4x32xf32>
    %cst_36 = arith.constant dense<0xFF800000> : vector<32xf32>
    %72 = vector.multi_reduction <maximumf>, %71, %cst_36 [0] : vector<4x32xf32> to vector<32xf32>
    %73 = vector.shape_cast %72 : vector<32xf32> to vector<1x32xf32>
    %cst_37 = arith.constant -4.605160e+00 : f32
    %74 = vector.broadcast %cst_37 : f32 to vector<1x32xf32>
    %75 = arith.maximumf %73, %74 : vector<1x32xf32>
    %76 = vector.broadcast %75 : vector<1x32xf32> to vector<4x32xf32>
    %77 = arith.subf %71, %76 : vector<4x32xf32>
    %78 = math.exp %77 : vector<4x32xf32>
    %cst_38 = arith.constant dense<0.000000e+00> : vector<32xf32>
    %79 = vector.multi_reduction <add>, %78, %cst_38 [0] : vector<4x32xf32> to vector<32xf32>
    %80 = vector.shape_cast %79 : vector<32xf32> to vector<1x32xf32>
    %cst_39 = arith.constant -4.605160e+00 : f32
    %81 = vector.broadcast %cst_39 : f32 to vector<1x32xf32>
    %82 = arith.subf %81, %75 : vector<1x32xf32>
    %83 = math.exp %82 : vector<1x32xf32>
    %84 = arith.addf %80, %83 : vector<1x32xf32>
    %85 = math.log %84 : vector<1x32xf32>
    %86 = arith.addf %85, %75 : vector<1x32xf32>
    %87 = arith.addf %71, %68 : vector<4x32xf32>
    %cst_40 = arith.constant dense<0xFF800000> : vector<32xf32>
    %88 = vector.multi_reduction <maximumf>, %87, %cst_40 [0] : vector<4x32xf32> to vector<32xf32>
    %89 = vector.shape_cast %88 : vector<32xf32> to vector<1x32xf32>
    %cst_41 = arith.constant -9.210320e+00 : f32
    %90 = vector.broadcast %cst_41 : f32 to vector<1x32xf32>
    %91 = arith.maximumf %89, %90 : vector<1x32xf32>
    %92 = vector.broadcast %91 : vector<1x32xf32> to vector<4x32xf32>
    %93 = arith.subf %87, %92 : vector<4x32xf32>
    %94 = math.exp %93 : vector<4x32xf32>
    %cst_42 = arith.constant -9.210320e+00 : f32
    %95 = vector.broadcast %cst_42 : f32 to vector<1x32xf32>
    %96 = arith.subf %95, %91 : vector<1x32xf32>
    %97 = math.exp %96 : vector<1x32xf32>
    %cst_43 = arith.constant dense<0.000000e+00> : vector<32xf32>
    %98 = vector.multi_reduction <add>, %94, %cst_43 [0] : vector<4x32xf32> to vector<32xf32>
    %99 = vector.shape_cast %98 : vector<32xf32> to vector<1x32xf32>
    %100 = arith.addf %99, %97 : vector<1x32xf32>
    %101 = math.log %100 : vector<1x32xf32>
    %102 = arith.addf %101, %91 : vector<1x32xf32>
    %cst_44 = arith.constant 1.000000e+00 : f32
    %103 = vector.broadcast %cst_44 : f32 to vector<1x32xf32>
    %104 = arith.divf %103, %100 : vector<1x32xf32>
    %105 = vector.broadcast %104 : vector<1x32xf32> to vector<4x32xf32>
    %106 = arith.mulf %94, %105 : vector<4x32xf32>
    %107 = arith.mulf %97, %104 : vector<1x32xf32>
    %108 = vector.shape_cast %107 : vector<1x32xf32> to vector<32xf32>
    %c0_45 = arith.constant 0 : index
    %c0_46 = arith.constant 0 : index
    %c0_47 = arith.constant 0 : index
    %109 = vector.load %arg6[%c0_45, %c0_46, %c0_47] : memref<1x1x32xf32, #tpu.memory_space<vmem>>, vector<1x1x32xf32>
    %110 = vector.shape_cast %109 : vector<1x1x32xf32> to vector<1x32xf32>
    %111 = vector.shape_cast %102 : vector<1x32xf32> to vector<1x1x32xf32>
    tpu.vector_store %arg6[%c0_45, %c0_46, %c0_47], %111 {strides = array<i32>} : memref<1x1x32xf32, #tpu.memory_space<vmem>>, vector<1x1x32xf32>,
    %112 = tpu.iota {dimensions = array<i32: 0>} : vector<4x32xi32>
    %113 = vector.broadcast %89 : vector<1x32xf32> to vector<4x32xf32>
    %114 = arith.cmpf oge, %87, %113 : vector<4x32xf32>
    %c4_i32 = arith.constant 4 : i32
    %115 = vector.broadcast %c4_i32 : i32 to vector<4x32xi32>
    %116 = arith.select %114, %112, %115 : vector<4x32xi1>, vector<4x32xi32>
    %cst_48 = arith.constant dense<2147483647> : vector<32xi32>
    %117 = vector.multi_reduction <minsi>, %116, %cst_48 [0] : vector<4x32xi32> to vector<32xi32>
    %118 = vector.shape_cast %117 : vector<32xi32> to vector<1x32xi32>
    %119 = vector.broadcast %118 : vector<1x32xi32> to vector<4x32xi32>
    %120 = arith.cmpi eq, %112, %119 : vector<4x32xi32>
    %121 = arith.extui %120 : vector<4x32xi1> to vector<4x32xi32>
    %122 = arith.sitofp %121 : vector<4x32xi32> to vector<4x32xf32>
    %c0_49 = arith.constant 0 : index
    %c0_50 = arith.constant 0 : index
    %c0_51 = arith.constant 0 : index
    %123 = vector.load %arg2[%c0_49, %c0_50, %c0_51] : memref<1x24x32xf32, #tpu.memory_space<vmem>>, vector<1x4x32xf32>
    %124 = vector.shape_cast %123 : vector<1x4x32xf32> to vector<4x32xf32>
    %125 = arith.mulf %122, %124 : vector<4x32xf32>
    %cst_52 = arith.constant dense<0.000000e+00> : vector<32xf32>
    %126 = vector.multi_reduction <add>, %125, %cst_52 [0] : vector<4x32xf32> to vector<32xf32>
    %c0_53 = arith.constant 0 : index
    %c0_54 = arith.constant 0 : index
    %c0_55 = arith.constant 0 : index
    %127 = vector.load %arg8[%c0_53, %c0_54, %c0_55] : memref<1x6x32xf32, #tpu.memory_space<vmem>>, vector<1x1x32xf32>
    %128 = vector.shape_cast %127 : vector<1x1x32xf32> to vector<32xf32>
    %129 = vector.shape_cast %126 : vector<32xf32> to vector<1x1x32xf32>
    tpu.vector_store %arg8[%c0_53, %c0_54, %c0_55], %129 {strides = array<i32>} : memref<1x6x32xf32, #tpu.memory_space<vmem>>, vector<1x1x32xf32>,
    %130 = arith.mulf %106, %124 : vector<4x32xf32>
    %cst_56 = arith.constant dense<0.000000e+00> : vector<32xf32>
    %131 = vector.multi_reduction <add>, %130, %cst_56 [0] : vector<4x32xf32> to vector<32xf32>
    %c0_57 = arith.constant 0 : index
    %c0_58 = arith.constant 0 : index
    %132 = vector.load %arg5[%c0_57, %c0_58] : memref<6x32xf32, #tpu.memory_space<vmem>>, vector<1x32xf32>
    %133 = vector.shape_cast %132 : vector<1x32xf32> to vector<32xf32>
    %134 = arith.mulf %108, %133 : vector<32xf32>
    %135 = arith.addf %131, %134 : vector<32xf32>
    %c0_59 = arith.constant 0 : index
    %c0_60 = arith.constant 0 : index
    %c0_61 = arith.constant 0 : index
    %136 = vector.load %arg13[%c0_59, %c0_60, %c0_61] : memref<1x6x32xf32, #tpu.memory_space<vmem>>, vector<1x1x32xf32>
    %137 = vector.shape_cast %136 : vector<1x1x32xf32> to vector<32xf32>
    %138 = vector.shape_cast %135 : vector<32xf32> to vector<1x1x32xf32>
    tpu.vector_store %arg13[%c0_59, %c0_60, %c0_61], %138 {strides = array<i32>} : memref<1x6x32xf32, #tpu.memory_space<vmem>>, vector<1x1x32xf32>,
    %c0_62 = arith.constant 0 : index
    %c4_63 = arith.constant 4 : index
    %c0_64 = arith.constant 0 : index
    %139 = vector.load %arg2[%c0_62, %c4_63, %c0_64] : memref<1x24x32xf32, #tpu.memory_space<vmem>>, vector<1x4x32xf32>
    %140 = vector.shape_cast %139 : vector<1x4x32xf32> to vector<4x32xf32>
    %141 = arith.mulf %122, %140 : vector<4x32xf32>
    %cst_65 = arith.constant dense<0.000000e+00> : vector<32xf32>
    %142 = vector.multi_reduction <add>, %141, %cst_65 [0] : vector<4x32xf32> to vector<32xf32>
    %c0_66 = arith.constant 0 : index
    %c1_67 = arith.constant 1 : index
    %c0_68 = arith.constant 0 : index
    %143 = vector.load %arg8[%c0_66, %c1_67, %c0_68] : memref<1x6x32xf32, #tpu.memory_space<vmem>>, vector<1x1x32xf32>
    %144 = vector.shape_cast %143 : vector<1x1x32xf32> to vector<32xf32>
    %145 = vector.shape_cast %142 : vector<32xf32> to vector<1x1x32xf32>
    tpu.vector_store %arg8[%c0_66, %c1_67, %c0_68], %145 {strides = array<i32>} : memref<1x6x32xf32, #tpu.memory_space<vmem>>, vector<1x1x32xf32>,
    %146 = arith.mulf %106, %140 : vector<4x32xf32>
    %cst_69 = arith.constant dense<0.000000e+00> : vector<32xf32>
    %147 = vector.multi_reduction <add>, %146, %cst_69 [0] : vector<4x32xf32> to vector<32xf32>
    %c1_70 = arith.constant 1 : index
    %c0_71 = arith.constant 0 : index
    %148 = vector.load %arg5[%c1_70, %c0_71] : memref<6x32xf32, #tpu.memory_space<vmem>>, vector<1x32xf32>
    %149 = vector.shape_cast %148 : vector<1x32xf32> to vector<32xf32>
    %150 = arith.mulf %108, %149 : vector<32xf32>
    %151 = arith.addf %147, %150 : vector<32xf32>
    %c0_72 = arith.constant 0 : index
    %c1_73 = arith.constant 1 : index
    %c0_74 = arith.constant 0 : index
    %152 = vector.load %arg13[%c0_72, %c1_73, %c0_74] : memref<1x6x32xf32, #tpu.memory_space<vmem>>, vector<1x1x32xf32>
    %153 = vector.shape_cast %152 : vector<1x1x32xf32> to vector<32xf32>
    %154 = vector.shape_cast %151 : vector<32xf32> to vector<1x1x32xf32>
    tpu.vector_store %arg13[%c0_72, %c1_73, %c0_74], %154 {strides = array<i32>} : memref<1x6x32xf32, #tpu.memory_space<vmem>>, vector<1x1x32xf32>,
    %c0_75 = arith.constant 0 : index
    %c8_76 = arith.constant 8 : index
    %c0_77 = arith.constant 0 : index
    %155 = vector.load %arg2[%c0_75, %c8_76, %c0_77] : memref<1x24x32xf32, #tpu.memory_space<vmem>>, vector<1x4x32xf32>
    %156 = vector.shape_cast %155 : vector<1x4x32xf32> to vector<4x32xf32>
    %157 = arith.mulf %122, %156 : vector<4x32xf32>
    %cst_78 = arith.constant dense<0.000000e+00> : vector<32xf32>
    %158 = vector.multi_reduction <add>, %157, %cst_78 [0] : vector<4x32xf32> to vector<32xf32>
    %c0_79 = arith.constant 0 : index
    %c2_80 = arith.constant 2 : index
    %c0_81 = arith.constant 0 : index
    %159 = vector.load %arg8[%c0_79, %c2_80, %c0_81] : memref<1x6x32xf32, #tpu.memory_space<vmem>>, vector<1x1x32xf32>
    %160 = vector.shape_cast %159 : vector<1x1x32xf32> to vector<32xf32>
    %161 = vector.shape_cast %158 : vector<32xf32> to vector<1x1x32xf32>
    tpu.vector_store %arg8[%c0_79, %c2_80, %c0_81], %161 {strides = array<i32>} : memref<1x6x32xf32, #tpu.memory_space<vmem>>, vector<1x1x32xf32>,
    %162 = arith.mulf %106, %156 : vector<4x32xf32>
    %cst_82 = arith.constant dense<0.000000e+00> : vector<32xf32>
    %163 = vector.multi_reduction <add>, %162, %cst_82 [0] : vector<4x32xf32> to vector<32xf32>
    %c2_83 = arith.constant 2 : index
    %c0_84 = arith.constant 0 : index
    %164 = vector.load %arg5[%c2_83, %c0_84] : memref<6x32xf32, #tpu.memory_space<vmem>>, vector<1x32xf32>
    %165 = vector.shape_cast %164 : vector<1x32xf32> to vector<32xf32>
    %166 = arith.mulf %108, %165 : vector<32xf32>
    %167 = arith.addf %163, %166 : vector<32xf32>
    %c0_85 = arith.constant 0 : index
    %c2_86 = arith.constant 2 : index
    %c0_87 = arith.constant 0 : index
    %168 = vector.load %arg13[%c0_85, %c2_86, %c0_87] : memref<1x6x32xf32, #tpu.memory_space<vmem>>, vector<1x1x32xf32>
    %169 = vector.shape_cast %168 : vector<1x1x32xf32> to vector<32xf32>
    %170 = vector.shape_cast %167 : vector<32xf32> to vector<1x1x32xf32>
    tpu.vector_store %arg13[%c0_85, %c2_86, %c0_87], %170 {strides = array<i32>} : memref<1x6x32xf32, #tpu.memory_space<vmem>>, vector<1x1x32xf32>,
    %c0_88 = arith.constant 0 : index
    %c12_89 = arith.constant 12 : index
    %c0_90 = arith.constant 0 : index
    %171 = vector.load %arg2[%c0_88, %c12_89, %c0_90] : memref<1x24x32xf32, #tpu.memory_space<vmem>>, vector<1x4x32xf32>
    %172 = vector.shape_cast %171 : vector<1x4x32xf32> to vector<4x32xf32>
    %173 = arith.mulf %122, %172 : vector<4x32xf32>
    %cst_91 = arith.constant dense<0.000000e+00> : vector<32xf32>
    %174 = vector.multi_reduction <add>, %173, %cst_91 [0] : vector<4x32xf32> to vector<32xf32>
    %c0_92 = arith.constant 0 : index
    %c3_93 = arith.constant 3 : index
    %c0_94 = arith.constant 0 : index
    %175 = vector.load %arg8[%c0_92, %c3_93, %c0_94] : memref<1x6x32xf32, #tpu.memory_space<vmem>>, vector<1x1x32xf32>
    %176 = vector.shape_cast %175 : vector<1x1x32xf32> to vector<32xf32>
    %177 = vector.shape_cast %174 : vector<32xf32> to vector<1x1x32xf32>
    tpu.vector_store %arg8[%c0_92, %c3_93, %c0_94], %177 {strides = array<i32>} : memref<1x6x32xf32, #tpu.memory_space<vmem>>, vector<1x1x32xf32>,
    %178 = arith.mulf %106, %172 : vector<4x32xf32>
    %cst_95 = arith.constant dense<0.000000e+00> : vector<32xf32>
    %179 = vector.multi_reduction <add>, %178, %cst_95 [0] : vector<4x32xf32> to vector<32xf32>
    %c3_96 = arith.constant 3 : index
    %c0_97 = arith.constant 0 : index
    %180 = vector.load %arg5[%c3_96, %c0_97] : memref<6x32xf32, #tpu.memory_space<vmem>>, vector<1x32xf32>
    %181 = vector.shape_cast %180 : vector<1x32xf32> to vector<32xf32>
    %182 = arith.mulf %108, %181 : vector<32xf32>
    %183 = arith.addf %179, %182 : vector<32xf32>
    %c0_98 = arith.constant 0 : index
    %c3_99 = arith.constant 3 : index
    %c0_100 = arith.constant 0 : index
    %184 = vector.load %arg13[%c0_98, %c3_99, %c0_100] : memref<1x6x32xf32, #tpu.memory_space<vmem>>, vector<1x1x32xf32>
    %185 = vector.shape_cast %184 : vector<1x1x32xf32> to vector<32xf32>
    %186 = vector.shape_cast %183 : vector<32xf32> to vector<1x1x32xf32>
    tpu.vector_store %arg13[%c0_98, %c3_99, %c0_100], %186 {strides = array<i32>} : memref<1x6x32xf32, #tpu.memory_space<vmem>>, vector<1x1x32xf32>,
    %c0_101 = arith.constant 0 : index
    %c16_102 = arith.constant 16 : index
    %c0_103 = arith.constant 0 : index
    %187 = vector.load %arg2[%c0_101, %c16_102, %c0_103] : memref<1x24x32xf32, #tpu.memory_space<vmem>>, vector<1x4x32xf32>
    %188 = vector.shape_cast %187 : vector<1x4x32xf32> to vector<4x32xf32>
    %189 = arith.mulf %122, %188 : vector<4x32xf32>
    %cst_104 = arith.constant dense<0.000000e+00> : vector<32xf32>
    %190 = vector.multi_reduction <add>, %189, %cst_104 [0] : vector<4x32xf32> to vector<32xf32>
    %c0_105 = arith.constant 0 : index
    %c4_106 = arith.constant 4 : index
    %c0_107 = arith.constant 0 : index
    %191 = vector.load %arg8[%c0_105, %c4_106, %c0_107] : memref<1x6x32xf32, #tpu.memory_space<vmem>>, vector<1x1x32xf32>
    %192 = vector.shape_cast %191 : vector<1x1x32xf32> to vector<32xf32>
    %193 = vector.shape_cast %190 : vector<32xf32> to vector<1x1x32xf32>
    tpu.vector_store %arg8[%c0_105, %c4_106, %c0_107], %193 {strides = array<i32>} : memref<1x6x32xf32, #tpu.memory_space<vmem>>, vector<1x1x32xf32>,
    %194 = arith.mulf %106, %188 : vector<4x32xf32>
    %cst_108 = arith.constant dense<0.000000e+00> : vector<32xf32>
    %195 = vector.multi_reduction <add>, %194, %cst_108 [0] : vector<4x32xf32> to vector<32xf32>
    %c4_109 = arith.constant 4 : index
    %c0_110 = arith.constant 0 : index
    %196 = vector.load %arg5[%c4_109, %c0_110] : memref<6x32xf32, #tpu.memory_space<vmem>>, vector<1x32xf32>
    %197 = vector.shape_cast %196 : vector<1x32xf32> to vector<32xf32>
    %198 = arith.mulf %108, %197 : vector<32xf32>
    %199 = arith.addf %195, %198 : vector<32xf32>
    %c0_111 = arith.constant 0 : index
    %c4_112 = arith.constant 4 : index
    %c0_113 = arith.constant 0 : index
    %200 = vector.load %arg13[%c0_111, %c4_112, %c0_113] : memref<1x6x32xf32, #tpu.memory_space<vmem>>, vector<1x1x32xf32>
    %201 = vector.shape_cast %200 : vector<1x1x32xf32> to vector<32xf32>
    %202 = vector.shape_cast %199 : vector<32xf32> to vector<1x1x32xf32>
    tpu.vector_store %arg13[%c0_111, %c4_112, %c0_113], %202 {strides = array<i32>} : memref<1x6x32xf32, #tpu.memory_space<vmem>>, vector<1x1x32xf32>,
    %c0_114 = arith.constant 0 : index
    %c20_115 = arith.constant 20 : index
    %c0_116 = arith.constant 0 : index
    %203 = vector.load %arg2[%c0_114, %c20_115, %c0_116] : memref<1x24x32xf32, #tpu.memory_space<vmem>>, vector<1x4x32xf32>
    %204 = vector.shape_cast %203 : vector<1x4x32xf32> to vector<4x32xf32>
    %205 = arith.mulf %122, %204 : vector<4x32xf32>
    %cst_117 = arith.constant dense<0.000000e+00> : vector<32xf32>
    %206 = vector.multi_reduction <add>, %205, %cst_117 [0] : vector<4x32xf32> to vector<32xf32>
    %c0_118 = arith.constant 0 : index
    %c5_119 = arith.constant 5 : index
    %c0_120 = arith.constant 0 : index
    %207 = vector.load %arg8[%c0_118, %c5_119, %c0_120] : memref<1x6x32xf32, #tpu.memory_space<vmem>>, vector<1x1x32xf32>
    %208 = vector.shape_cast %207 : vector<1x1x32xf32> to vector<32xf32>
    %209 = vector.shape_cast %206 : vector<32xf32> to vector<1x1x32xf32>
    tpu.vector_store %arg8[%c0_118, %c5_119, %c0_120], %209 {strides = array<i32>} : memref<1x6x32xf32, #tpu.memory_space<vmem>>, vector<1x1x32xf32>,
    %210 = arith.mulf %106, %204 : vector<4x32xf32>
    %cst_121 = arith.constant dense<0.000000e+00> : vector<32xf32>
    %211 = vector.multi_reduction <add>, %210, %cst_121 [0] : vector<4x32xf32> to vector<32xf32>
    %c5_122 = arith.constant 5 : index
    %c0_123 = arith.constant 0 : index
    %212 = vector.load %arg5[%c5_122, %c0_123] : memref<6x32xf32, #tpu.memory_space<vmem>>, vector<1x32xf32>
    %213 = vector.shape_cast %212 : vector<1x32xf32> to vector<32xf32>
    %214 = arith.mulf %108, %213 : vector<32xf32>
    %215 = arith.addf %211, %214 : vector<32xf32>
    %c0_124 = arith.constant 0 : index
    %c5_125 = arith.constant 5 : index
    %c0_126 = arith.constant 0 : index
    %216 = vector.load %arg13[%c0_124, %c5_125, %c0_126] : memref<1x6x32xf32, #tpu.memory_space<vmem>>, vector<1x1x32xf32>
    %217 = vector.shape_cast %216 : vector<1x1x32xf32> to vector<32xf32>
    %218 = vector.shape_cast %215 : vector<32xf32> to vector<1x1x32xf32>
    tpu.vector_store %arg13[%c0_124, %c5_125, %c0_126], %218 {strides = array<i32>} : memref<1x6x32xf32, #tpu.memory_space<vmem>>, vector<1x1x32xf32>,
    %219 = arith.mulf %122, %3 : vector<4x32xf32>
    %cst_127 = arith.constant dense<0.000000e+00> : vector<32xf32>
    %220 = vector.multi_reduction <add>, %219, %cst_127 [0] : vector<4x32xf32> to vector<32xf32>
    %221 = vector.shape_cast %220 : vector<32xf32> to vector<1x32xf32>
    %c0_128 = arith.constant 0 : index
    %c0_129 = arith.constant 0 : index
    %c0_130 = arith.constant 0 : index
    %222 = vector.load %arg9[%c0_128, %c0_129, %c0_130] : memref<1x1x32xf32, #tpu.memory_space<vmem>>, vector<1x1x32xf32>
    %223 = vector.shape_cast %222 : vector<1x1x32xf32> to vector<1x32xf32>
    %224 = vector.shape_cast %221 : vector<1x32xf32> to vector<1x1x32xf32>
    tpu.vector_store %arg9[%c0_128, %c0_129, %c0_130], %224 {strides = array<i32>} : memref<1x1x32xf32, #tpu.memory_space<vmem>>, vector<1x1x32xf32>,
    %225 = arith.mulf %106, %3 : vector<4x32xf32>
    %cst_131 = arith.constant dense<0.000000e+00> : vector<32xf32>
    %226 = vector.multi_reduction <add>, %225, %cst_131 [0] : vector<4x32xf32> to vector<32xf32>
    %227 = vector.shape_cast %226 : vector<32xf32> to vector<1x32xf32>
    %c0_132 = arith.constant 0 : index
    %c0_133 = arith.constant 0 : index
    %c0_134 = arith.constant 0 : index
    %228 = vector.load %arg14[%c0_132, %c0_133, %c0_134] : memref<1x1x32xf32, #tpu.memory_space<vmem>>, vector<1x1x32xf32>
    %229 = vector.shape_cast %228 : vector<1x1x32xf32> to vector<1x32xf32>
    %230 = vector.shape_cast %227 : vector<1x32xf32> to vector<1x1x32xf32>
    tpu.vector_store %arg14[%c0_132, %c0_133, %c0_134], %230 {strides = array<i32>} : memref<1x1x32xf32, #tpu.memory_space<vmem>>, vector<1x1x32xf32>,
    %cst_135 = arith.constant -4.605160e+00 : f32
    %231 = vector.broadcast %cst_135 : f32 to vector<4x32xf32>
    %232 = arith.cmpf ogt, %71, %231 : vector<4x32xf32>
    %233 = arith.extui %232 : vector<4x32xi1> to vector<4x32xi32>
    %234 = arith.sitofp %233 : vector<4x32xi32> to vector<4x32xf32>
    %c0_136 = arith.constant 0 : index
    %c0_137 = arith.constant 0 : index
    %c0_138 = arith.constant 0 : index
    %235 = vector.load %arg7[%c0_136, %c0_137, %c0_138] : memref<1x4x32xf32, #tpu.memory_space<vmem>>, vector<1x4x32xf32>
    %236 = vector.shape_cast %235 : vector<1x4x32xf32> to vector<4x32xf32>
    %237 = vector.shape_cast %234 : vector<4x32xf32> to vector<1x4x32xf32>
    tpu.vector_store %arg7[%c0_136, %c0_137, %c0_138], %237 {strides = array<i32>} : memref<1x4x32xf32, #tpu.memory_space<vmem>>, vector<1x4x32xf32>,
    %c0_139 = arith.constant 0 : index
    %c0_140 = arith.constant 0 : index
    %c0_141 = arith.constant 0 : index
    %238 = vector.load %arg10[%c0_139, %c0_140, %c0_141] : memref<1x1x32xi32, #tpu.memory_space<vmem>>, vector<1x1x32xi32>
    %239 = vector.shape_cast %238 : vector<1x1x32xi32> to vector<1x32xi32>
    %240 = vector.shape_cast %118 : vector<1x32xi32> to vector<1x1x32xi32>
    tpu.vector_store %arg10[%c0_139, %c0_140, %c0_141], %240 {strides = array<i32>} : memref<1x1x32xi32, #tpu.memory_space<vmem>>, vector<1x1x32xi32>,
    %c0_142 = arith.constant 0 : index
    %c0_143 = arith.constant 0 : index
    %c0_144 = arith.constant 0 : index
    %241 = vector.load %arg15[%c0_142, %c0_143, %c0_144] : memref<1x4x32xf32, #tpu.memory_space<vmem>>, vector<1x4x32xf32>
    %242 = vector.shape_cast %241 : vector<1x4x32xf32> to vector<4x32xf32>
    %243 = vector.shape_cast %106 : vector<4x32xf32> to vector<1x4x32xf32>
    tpu.vector_store %arg15[%c0_142, %c0_143, %c0_144], %243 {strides = array<i32>} : memref<1x4x32xf32, #tpu.memory_space<vmem>>, vector<1x4x32xf32>,
    %c0_145 = arith.constant 0 : index
    %c0_146 = arith.constant 0 : index
    %c0_147 = arith.constant 0 : index
    %244 = vector.load %arg11[%c0_145, %c0_146, %c0_147] : memref<1x5x32xf32, #tpu.memory_space<vmem>>, vector<1x4x32xf32>
    %245 = vector.shape_cast %244 : vector<1x4x32xf32> to vector<4x32xf32>
    %246 = vector.shape_cast %71 : vector<4x32xf32> to vector<1x4x32xf32>
    tpu.vector_store %arg11[%c0_145, %c0_146, %c0_147], %246 {strides = array<i32>} : memref<1x5x32xf32, #tpu.memory_space<vmem>>, vector<1x4x32xf32>,
    %cst_148 = arith.constant -4.605160e+00 : f32
    %247 = vector.broadcast %cst_148 : f32 to vector<32xf32>
    %c0_149 = arith.constant 0 : index
    %c4_150 = arith.constant 4 : index
    %c0_151 = arith.constant 0 : index
    %248 = vector.load %arg11[%c0_149, %c4_150, %c0_151] : memref<1x5x32xf32, #tpu.memory_space<vmem>>, vector<1x1x32xf32>
    %249 = vector.shape_cast %248 : vector<1x1x32xf32> to vector<32xf32>
    %250 = vector.shape_cast %247 : vector<32xf32> to vector<1x1x32xf32>
    tpu.vector_store %arg11[%c0_149, %c4_150, %c0_151], %250 {strides = array<i32>} : memref<1x5x32xf32, #tpu.memory_space<vmem>>, vector<1x1x32xf32>,
    %251 = vector.broadcast %86 : vector<1x32xf32> to vector<4x32xf32>
    %252 = arith.subf %71, %251 : vector<4x32xf32>
    %c0_152 = arith.constant 0 : index
    %c0_153 = arith.constant 0 : index
    %c0_154 = arith.constant 0 : index
    %253 = vector.load %arg12[%c0_152, %c0_153, %c0_154] : memref<1x5x32xf32, #tpu.memory_space<vmem>>, vector<1x4x32xf32>
    %254 = vector.shape_cast %253 : vector<1x4x32xf32> to vector<4x32xf32>
    %255 = vector.shape_cast %252 : vector<4x32xf32> to vector<1x4x32xf32>
    tpu.vector_store %arg12[%c0_152, %c0_153, %c0_154], %255 {strides = array<i32>} : memref<1x5x32xf32, #tpu.memory_space<vmem>>, vector<1x4x32xf32>,
    %256 = vector.shape_cast %86 : vector<1x32xf32> to vector<32xf32>
    %cst_155 = arith.constant -4.605160e+00 : f32
    %257 = vector.broadcast %cst_155 : f32 to vector<32xf32>
    %258 = arith.subf %257, %256 : vector<32xf32>
    %c0_156 = arith.constant 0 : index
    %c4_157 = arith.constant 4 : index
    %c0_158 = arith.constant 0 : index
    %259 = vector.load %arg12[%c0_156, %c4_157, %c0_158] : memref<1x5x32xf32, #tpu.memory_space<vmem>>, vector<1x1x32xf32>
    %260 = vector.shape_cast %259 : vector<1x1x32xf32> to vector<32xf32>
    %261 = vector.shape_cast %258 : vector<32xf32> to vector<1x1x32xf32>
    tpu.vector_store %arg12[%c0_156, %c4_157, %c0_158], %261 {strides = array<i32>} : memref<1x5x32xf32, #tpu.memory_space<vmem>>, vector<1x1x32xf32>,
    return
  }
  func.func @transform_0(%arg0: i32) -> (i32, i32, i32) {
    %c0_i32 = arith.constant 0 : i32
    %c0_i32_0 = arith.constant 0 : i32
    %c0_i32_1 = arith.constant 0 : i32
    return %arg0, %c0_i32, %c0_i32_0 : i32, i32, i32
  }
  func.func @transform_1(%arg0: i32) -> (i32, i32, i32) {
    %c0_i32 = arith.constant 0 : i32
    %c0_i32_0 = arith.constant 0 : i32
    %c0_i32_1 = arith.constant 0 : i32
    return %arg0, %c0_i32, %c0_i32_0 : i32, i32, i32
  }
  func.func @transform_2(%arg0: i32) -> (i32, i32, i32) {
    %c0_i32 = arith.constant 0 : i32
    %c0_i32_0 = arith.constant 0 : i32
    %c0_i32_1 = arith.constant 0 : i32
    return %arg0, %c0_i32, %c0_i32_0 : i32, i32, i32
  }
  func.func @transform_3(%arg0: i32) -> (i32, i32, i32) {
    %c0_i32 = arith.constant 0 : i32
    %c0_i32_0 = arith.constant 0 : i32
    %c0_i32_1 = arith.constant 0 : i32
    return %arg0, %c0_i32, %c0_i32_0 : i32, i32, i32
  }
  func.func @transform_4(%arg0: i32) -> (i32, i32) {
    %c0_i32 = arith.constant 0 : i32
    %c0_i32_0 = arith.constant 0 : i32
    %c0_i32_1 = arith.constant 0 : i32
    return %c0_i32, %c0_i32_0 : i32, i32
  }
  func.func @transform_5(%arg0: i32) -> (i32, i32, i32) {
    %c0_i32 = arith.constant 0 : i32
    %c0_i32_0 = arith.constant 0 : i32
    %c0_i32_1 = arith.constant 0 : i32
    return %arg0, %c0_i32, %c0_i32_0 : i32, i32, i32
  }
  func.func @transform_6(%arg0: i32) -> (i32, i32, i32) {
    %c0_i32 = arith.constant 0 : i32
    %c0_i32_0 = arith.constant 0 : i32
    %c0_i32_1 = arith.constant 0 : i32
    return %arg0, %c0_i32, %c0_i32_0 : i32, i32, i32
  }
  func.func @transform_7(%arg0: i32) -> (i32, i32, i32) {
    %c0_i32 = arith.constant 0 : i32
    %c0_i32_0 = arith.constant 0 : i32
    %c0_i32_1 = arith.constant 0 : i32
    return %arg0, %c0_i32, %c0_i32_0 : i32, i32, i32
  }
  func.func @transform_8(%arg0: i32) -> (i32, i32, i32) {
    %c0_i32 = arith.constant 0 : i32
    %c0_i32_0 = arith.constant 0 : i32
    %c0_i32_1 = arith.constant 0 : i32
    return %arg0, %c0_i32, %c0_i32_0 : i32, i32, i32
  }
  func.func @transform_9(%arg0: i32) -> (i32, i32, i32) {
    %c0_i32 = arith.constant 0 : i32
    %c0_i32_0 = arith.constant 0 : i32
    %c0_i32_1 = arith.constant 0 : i32
    return %arg0, %c0_i32, %c0_i32_0 : i32, i32, i32
  }
  func.func @transform_10(%arg0: i32) -> (i32, i32, i32) {
    %c0_i32 = arith.constant 0 : i32
    %c0_i32_0 = arith.constant 0 : i32
    %c0_i32_1 = arith.constant 0 : i32
    return %arg0, %c0_i32, %c0_i32_0 : i32, i32, i32
  }
  func.func @transform_11(%arg0: i32) -> (i32, i32, i32) {
    %c0_i32 = arith.constant 0 : i32
    %c0_i32_0 = arith.constant 0 : i32
    %c0_i32_1 = arith.constant 0 : i32
    return %arg0, %c0_i32, %c0_i32_0 : i32, i32, i32
  }
  func.func @transform_12(%arg0: i32) -> (i32, i32, i32) {
    %c0_i32 = arith.constant 0 : i32
    %c0_i32_0 = arith.constant 0 : i32
    %c0_i32_1 = arith.constant 0 : i32
    return %arg0, %c0_i32, %c0_i32_0 : i32, i32, i32
  }
  func.func @transform_13(%arg0: i32) -> (i32, i32, i32) {
    %c0_i32 = arith.constant 0 : i32
    %c0_i32_0 = arith.constant 0 : i32
    %c0_i32_1 = arith.constant 0 : i32
    return %arg0, %c0_i32, %c0_i32_0 : i32, i32, i32
  }
  func.func @transform_14(%arg0: i32) -> (i32, i32, i32) {
    %c0_i32 = arith.constant 0 : i32
    %c0_i32_0 = arith.constant 0 : i32
    %c0_i32_1 = arith.constant 0 : i32
    return %arg0, %c0_i32, %c0_i32_0 : i32, i32, i32
  }
}

</mosaic_0001>

<llo_original>
// kernel: tpu_custom_call.1
$region0: #{tpu_custom_call.1}
  #allocation0 [shape = 'u32[]', space=smem, size = 0x4, offset = 0x4, fixed_abs, tag = 'smem constant byte address 0x4 - core index']
  #allocation1 [shape = 'u32[144,128]{1,0:T(1,128)}', space=vmem, size = 0x12000, scoped, tag = 'internal scratch']
  %s0 = inlined_call_operand.vmem [shape: f32[1,6,32], index: 0, kind: input, shape index: {}]
  %s1 = inlined_call_operand.hbm [shape: f32[1,24,32], index: 1, kind: input, shape index: {}]
  %s2 = inlined_call_operand.vmem [shape: f32[1,4,32], index: 2, kind: input, shape index: {}]
  %s3 = inlined_call_operand.vmem [shape: f32[1,4,32], index: 3, kind: input, shape index: {}]
  %s4 = inlined_call_operand.vmem [shape: f32[6,32], index: 4, kind: input, shape index: {}]
  %s5 = inlined_call_operand.hbm [shape: f32[1,1,32], index: 5, kind: output, shape index: {0}]
  %s6 = inlined_call_operand.hbm [shape: f32[1,4,32], index: 6, kind: output, shape index: {1}]
  %s7 = inlined_call_operand.vmem [shape: f32[1,6,32], index: 7, kind: output, shape index: {2}]
  %s8 = inlined_call_operand.hbm [shape: f32[1,1,32], index: 8, kind: output, shape index: {3}]
  %s9 = inlined_call_operand.hbm [shape: s32[1,1,32], index: 9, kind: output, shape index: {4}]
  %s10 = inlined_call_operand.vmem [shape: f32[1,5,32], index: 10, kind: output, shape index: {5}]
  %s11 = inlined_call_operand.vmem [shape: f32[1,5,32], index: 11, kind: output, shape index: {6}]
  %s12 = inlined_call_operand.vmem [shape: f32[1,6,32], index: 12, kind: output, shape index: {7}]
  %s13 = inlined_call_operand.hbm [shape: f32[1,1,32], index: 13, kind: output, shape index: {8}]
  %s14 = inlined_call_operand.hbm [shape: f32[1,4,32], index: 14, kind: output, shape index: {9}]
  %15 = xla_tuple %s5, %s6, %s7, %s8, %s9, %s10, %s11, %s12, %s13, %s14
  %s16 = sld [smem:[#allocation0]]
  $region106: #{tpu_custom_call.1} parent=0
    _
  %s18 = ssub.s32 1, %s16
  %s19 = scalar_select 0, %s18, %s16
  $region1: #{tpu_custom_call.1} parent=0
    #allocation2 [shape = 'u8[12288]{0}', space=vmem, size = 0x3000, scoped, tag = 'input window, operand 1, single buffered']
    #allocation3 [shape = 's32[1]{0}', space=sflag, size = 0x4, scoped, tag = 'scoped memory for tpu_custom_call.1']
    #allocation4 [shape = 's32[1]{0}', space=sflag, size = 0x4, scoped, tag = 'scoped memory for tpu_custom_call.1']
    #allocation5 [shape = 'u8[512]{0}', space=vmem, size = 0x400, scoped, tag = 'output window, operand 0, single buffered']
    #allocation6 [shape = 'u8[2048]{0}', space=vmem, size = 0x800, scoped, tag = 'output window, operand 1, single buffered']
    #allocation7 [shape = 's32[1]{0}', space=sflag, size = 0x4, scoped, tag = 'scoped memory for tpu_custom_call.1']
    #allocation8 [shape = 'u8[512]{0}', space=vmem, size = 0x400, scoped, tag = 'output window, operand 3, single buffered']
    #allocation9 [shape = 'u8[512]{0}', space=vmem, size = 0x400, scoped, tag = 'output window, operand 4, single buffered']
    #allocation10 [shape = 's32[1]{0}', space=sflag, size = 0x4, scoped, tag = 'scoped memory for tpu_custom_call.1']
    #allocation11 [shape = 'u8[512]{0}', space=vmem, size = 0x400, scoped, tag = 'output window, operand 8, single buffered']
    #allocation12 [shape = 'u8[2048]{0}', space=vmem, size = 0x800, scoped, tag = 'output window, operand 9, single buffered']
    #allocation13 [shape = 's32[1]{0}', space=sflag, size = 0x4, scoped, tag = 'scoped memory for tpu_custom_call.1']
    %20 = vsyncpa [#allocation3], 0
    %21 = vsyncpa [#allocation4], 0
    %22 = vsyncpa [#allocation7], 0
    %23 = vsyncpa [#allocation10], 0
    %24 = vsyncpa [#allocation13], 0
    // Predicated region
    $region2: #{tpu_custom_call.1} parent=1 // pred_check
      _
    $region3: #{tpu_custom_call.1} parent=1 // pred_check_branch
      %26 = sbr.rel (0) target = $region5
    $region4: #{tpu_custom_call.1} parent=1 // pred_region
      _
    $region5: #{tpu_custom_call.1} parent=1 // pred_fallthru
      _
    // Predicated region
    $region6: #{tpu_custom_call.1} parent=1 // pred_check
      _
    $region7: #{tpu_custom_call.1} parent=1 // pred_check_branch
      %28 = sbr.rel (0) target = $region9
    $region8: #{tpu_custom_call.1} parent=1 // pred_region
      %s30 = ssub.s32 384, 384
      %31 = vsyncadd [#allocation3], %s30
      %s32 = sshll.u32 [#allocation2], 4
      %s33 = int_to_ptr.vmem [resolvable:$true] %s32
      %38 = dma.hbm_to_vmem [thread:$0]  %s1, 384, %s33, [#allocation3], 128, 128, 8
    $region9: #{tpu_custom_call.1} parent=1 // pred_fallthru
      _
    // Predicated region
    $region10: #{tpu_custom_call.1} parent=1 // pred_check
      _
    $region11: #{tpu_custom_call.1} parent=1 // pred_check_branch
      %40 = sbr.rel (0) target = $region13
    $region12: #{tpu_custom_call.1} parent=1 // pred_region
      _
    $region13: #{tpu_custom_call.1} parent=1 // pred_fallthru
      _
    // Predicated region
    $region14: #{tpu_custom_call.1} parent=1 // pred_check
      _
    $region15: #{tpu_custom_call.1} parent=1 // pred_check_branch
      %42 = sbr.rel (0) target = $region17
    $region16: #{tpu_custom_call.1} parent=1 // pred_region
      _
    $region17: #{tpu_custom_call.1} parent=1 // pred_fallthru
      _
    // Predicated region
    $region18: #{tpu_custom_call.1} parent=1 // pred_check
      _
    $region19: #{tpu_custom_call.1} parent=1 // pred_check_branch
      %44 = sbr.rel (0) target = $region21
    $region20: #{tpu_custom_call.1} parent=1 // pred_region
      _
    $region21: #{tpu_custom_call.1} parent=1 // pred_fallthru
      _
    // Predicated region
    $region22: #{tpu_custom_call.1} parent=1 // pred_check
      _
    $region23: #{tpu_custom_call.1} parent=1 // pred_check_branch
      %46 = sbr.rel (0) target = $region25
    $region24: #{tpu_custom_call.1} parent=1 // pred_region
      %47 = dma.done [#allocation3], 384
    $region25: #{tpu_custom_call.1} parent=1 // pred_fallthru
      _
    %v48 = vld [vmem:[%s2] sm:$0xf]
    %v49 = vld [vmem:[%s3] sm:$0xf]
    %v50 = vld [vmem:[%s0] sm:$0x1]
    %v51 = vld [vmem:[#allocation2] sm:$0xf]
    %v52 = vlaneseq
    %v53 = vshrl.u32 %v52, 7
    %v54 = vsub.s32 0, %v53
    %v55 = vrot.slane %v50, %v54
    %v56 = vsub.f32 %v51, %v55
    %v57 = vmul.f32 %v56, %v56
    %v58 = vadd.f32 %v57, 0.0
    %v59 = vld [vmem:[%s0 + $0x1] sm:$0x1]
    %v60 = vld [vmem:[#allocation2 + $0x4] sm:$0xf]
    %v61 = vlaneseq
    %v62 = vshrl.u32 %v61, 7
    %v63 = vsub.s32 0, %v62
    %v64 = vrot.slane %v59, %v63
    %v65 = vsub.f32 %v60, %v64
    %v66 = vmul.f32 %v65, %v65
    %v67 = vadd.f32 %v58, %v66
    %v68 = vld [vmem:[%s0 + $0x2] sm:$0x1]
    %v69 = vld [vmem:[#allocation2 + $0x8] sm:$0xf]
    %v70 = vlaneseq
    %v71 = vshrl.u32 %v70, 7
    %v72 = vsub.s32 0, %v71
    %v73 = vrot.slane %v68, %v72
    %v74 = vsub.f32 %v69, %v73
    %v75 = vmul.f32 %v74, %v74
    %v76 = vadd.f32 %v67, %v75
    %v77 = vld [vmem:[%s0 + $0x3] sm:$0x1]
    %v78 = vld [vmem:[#allocation2 + $0xc] sm:$0xf]
    %v79 = vlaneseq
    %v80 = vshrl.u32 %v79, 7
    %v81 = vsub.s32 0, %v80
    %v82 = vrot.slane %v77, %v81
    %v83 = vsub.f32 %v78, %v82
    %v84 = vmul.f32 %v83, %v83
    %v85 = vadd.f32 %v76, %v84
    %v86 = vld [vmem:[%s0 + $0x4] sm:$0x1]
    %v87 = vld [vmem:[#allocation2 + $0x10] sm:$0xf]
    %v88 = vlaneseq
    %v89 = vshrl.u32 %v88, 7
    %v90 = vsub.s32 0, %v89
    %v91 = vrot.slane %v86, %v90
    %v92 = vsub.f32 %v87, %v91
    %v93 = vmul.f32 %v92, %v92
    %v94 = vadd.f32 %v85, %v93
    %v95 = vld [vmem:[%s0 + $0x5] sm:$0x1]
    %v96 = vld [vmem:[#allocation2 + $0x14] sm:$0xf]
    %v97 = vlaneseq
    %v98 = vshrl.u32 %v97, 7
    %v99 = vsub.s32 0, %v98
    %v100 = vrot.slane %v95, %v99
    %v101 = vsub.f32 %v96, %v100
    %v102 = vmul.f32 %v101, %v101
    %v103 = vadd.f32 %v94, %v102
    %v104 = vmul.f32 %v103, -0.5
    %v105 = vmul.f32 %v48, %v48
    %v106 = vrcp.pop %v105
    %v107 = vmul.f32 %v104, %v106
    %v108 = vlog2.pop %v48
    %v109 = vmul.f32 %v108, 0.6931472
    %v110 = vmul.f32 %v109, 6.0
    %v111 = vsub.f32 %v107, %v110
    %v112 = vsub.f32 %v111, 5.5136313
    %v113 = vmax.f32 %v49, 1e-16
    %v114 = vlog2.pop %v113
    %v115 = vmul.f32 %v114, 0.6931472
    %vm116 = vcmask 257024
    %v117 = vsel %vm116, %v115, -inf
    %v118 = vrot.slane %v117, 4
    %v119 = vmax.f32 %v117, %v118
    %v120 = vrot.slane %v119, 2
    %v121 = vmax.f32 %v119, %v120
    %v122 = vrot.slane %v121, 1
    %v123 = vmax.f32 %v121, %v122
    %v124 = vmax.f32 %v123, -4.60516
    %v125 = vsub.f32 %v115, %v124
    %v126 = vmul.f32 %v125, 1.442695
    %v127 = vpow.pop %v126
    %v128 = vsel %vm116, %v127, 0.0
    %v129 = vrot.slane %v128, 4
    %v130 = vadd.f32 %v128, %v129
    %v131 = vrot.slane %v130, 2
    %v132 = vadd.f32 %v130, %v131
    %v133 = vrot.slane %v132, 1
    %v134 = vadd.f32 %v132, %v133
    %v135 = vsub.f32 -4.60516, %v124
    %v136 = vmul.f32 %v135, 1.442695
    %v137 = vpow.pop %v136
    %v138 = vadd.f32 %v134, %v137
    %v139 = vlog2.pop %v138
    %v140 = vmul.f32 %v139, 0.6931472
    %v141 = vadd.f32 %v140, %v124
    %v142 = vadd.f32 %v115, %v112
    %v143 = vsel %vm116, %v142, -inf
    %v144 = vrot.slane %v143, 4
    %v145 = vmax.f32 %v143, %v144
    %v146 = vrot.slane %v145, 2
    %v147 = vmax.f32 %v145, %v146
    %v148 = vrot.slane %v147, 1
    %v149 = vmax.f32 %v147, %v148
    %v150 = vmax.f32 %v149, -9.21032
    %v151 = vsub.f32 %v142, %v150
    %v152 = vmul.f32 %v151, 1.442695
    %v153 = vpow.pop %v152
    %v154 = vsub.f32 -9.21032, %v150
    %v155 = vmul.f32 %v154, 1.442695
    %v156 = vpow.pop %v155
    %v157 = vsel %vm116, %v153, 0.0
    %v158 = vrot.slane %v157, 4
    %v159 = vadd.f32 %v157, %v158
    %v160 = vrot.slane %v159, 2
    %v161 = vadd.f32 %v159, %v160
    %v162 = vrot.slane %v161, 1
    %v163 = vadd.f32 %v161, %v162
    %v164 = vadd.f32 %v163, %v156
    %v165 = vlog2.pop %v164
    %v166 = vmul.f32 %v165, 0.6931472
    %v167 = vadd.f32 %v166, %v150
    %v168 = vrcp.pop %v164
    %v169 = vmul.f32 1.0, %v168
    %v170 = vmul.f32 %v153, %v169
    %v171 = vmul.f32 %v156, %v169
    %vm172 = vcmask 253952
    %173 = vst.msk [vmem:[#allocation5] sm:$0x1] %vm172, %v167
    %v174 = vlaneseq
    %v175 = vshrl.u32 %v174, 7
    %vm176 = vcmp.ge.f32.partialorder %v142, %v149
    %v177 = vsel %vm176, %v175, 4
    %v178 = vsel %vm116, %v177, 2147483647
    %v179 = vrot.slane %v178, 4
    %vm180 = vcmp.lt.s32.totalorder %v178, %v179
    %v181 = vsel %vm180, %v178, %v179
    %v182 = vrot.slane %v181, 2
    %vm183 = vcmp.lt.s32.totalorder %v181, %v182
    %v184 = vsel %vm183, %v181, %v182
    %v185 = vrot.slane %v184, 1
    %vm186 = vcmp.lt.s32.totalorder %v184, %v185
    %v187 = vsel %vm186, %v184, %v185
    %vm188 = vcmp.eq.s32.totalorder %v175, %v187
    %v189 = vsel %vm188, 1, 0
    %v190 = vcvt.s32.f32 %v189
    %v191 = vld [vmem:[#allocation2] sm:$0xf]
    %v192 = vmul.f32 %v190, %v191
    %v193 = vsel %vm116, %v192, 0.0
    %v194 = vrot.slane %v193, 4
    %v195 = vadd.f32 %v193, %v194
    %v196 = vrot.slane %v195, 2
    %v197 = vadd.f32 %v195, %v196
    %v198 = vrot.slane %v197, 1
    %v199 = vadd.f32 %v197, %v198
    %200 = vst.msk [vmem:[%s7] sm:$0x1] %vm172, %v199
    %v201 = vmul.f32 %v170, %v191
    %v202 = vsel %vm116, %v201, 0.0
    %v203 = vrot.slane %v202, 4
    %v204 = vadd.f32 %v202, %v203
    %v205 = vrot.slane %v204, 2
    %v206 = vadd.f32 %v204, %v205
    %v207 = vrot.slane %v206, 1
    %v208 = vadd.f32 %v206, %v207
    %v209 = vld [vmem:[%s4] sm:$0x1]
    %v210 = vmul.f32 %v171, %v209
    %v211 = vadd.f32 %v208, %v210
    %212 = vst.msk [vmem:[%s12] sm:$0x1] %vm172, %v211
    %v213 = vld [vmem:[#allocation2 + $0x4] sm:$0xf]
    %v214 = vmul.f32 %v190, %v213
    %v215 = vsel %vm116, %v214, 0.0
    %v216 = vrot.slane %v215, 4
    %v217 = vadd.f32 %v215, %v216
    %v218 = vrot.slane %v217, 2
    %v219 = vadd.f32 %v217, %v218
    %v220 = vrot.slane %v219, 1
    %v221 = vadd.f32 %v219, %v220
    %222 = vst.msk [vmem:[%s7 + $0x1] sm:$0x1] %vm172, %v221
    %v223 = vmul.f32 %v170, %v213
    %v224 = vsel %vm116, %v223, 0.0
    %v225 = vrot.slane %v224, 4
    %v226 = vadd.f32 %v224, %v225
    %v227 = vrot.slane %v226, 2
    %v228 = vadd.f32 %v226, %v227
    %v229 = vrot.slane %v228, 1
    %v230 = vadd.f32 %v228, %v229
    %v231 = vld [vmem:[%s4 + $0x1] sm:$0x1]
    %v232 = vmul.f32 %v171, %v231
    %v233 = vadd.f32 %v230, %v232
    %234 = vst.msk [vmem:[%s12 + $0x1] sm:$0x1] %vm172, %v233
    %v235 = vld [vmem:[#allocation2 + $0x8] sm:$0xf]
    %v236 = vmul.f32 %v190, %v235
    %v237 = vsel %vm116, %v236, 0.0
    %v238 = vrot.slane %v237, 4
    %v239 = vadd.f32 %v237, %v238
    %v240 = vrot.slane %v239, 2
    %v241 = vadd.f32 %v239, %v240
    %v242 = vrot.slane %v241, 1
    %v243 = vadd.f32 %v241, %v242
    %244 = vst.msk [vmem:[%s7 + $0x2] sm:$0x1] %vm172, %v243
    %v245 = vmul.f32 %v170, %v235
    %v246 = vsel %vm116, %v245, 0.0
    %v247 = vrot.slane %v246, 4
    %v248 = vadd.f32 %v246, %v247
    %v249 = vrot.slane %v248, 2
    %v250 = vadd.f32 %v248, %v249
    %v251 = vrot.slane %v250, 1
    %v252 = vadd.f32 %v250, %v251
    %v253 = vld [vmem:[%s4 + $0x2] sm:$0x1]
    %v254 = vmul.f32 %v171, %v253
    %v255 = vadd.f32 %v252, %v254
    %256 = vst.msk [vmem:[%s12 + $0x2] sm:$0x1] %vm172, %v255
    %v257 = vld [vmem:[#allocation2 + $0xc] sm:$0xf]
    %v258 = vmul.f32 %v190, %v257
    %v259 = vsel %vm116, %v258, 0.0
    %v260 = vrot.slane %v259, 4
    %v261 = vadd.f32 %v259, %v260
    %v262 = vrot.slane %v261, 2
    %v263 = vadd.f32 %v261, %v262
    %v264 = vrot.slane %v263, 1
    %v265 = vadd.f32 %v263, %v264
    %266 = vst.msk [vmem:[%s7 + $0x3] sm:$0x1] %vm172, %v265
    %v267 = vmul.f32 %v170, %v257
    %v268 = vsel %vm116, %v267, 0.0
    %v269 = vrot.slane %v268, 4
    %v270 = vadd.f32 %v268, %v269
    %v271 = vrot.slane %v270, 2
    %v272 = vadd.f32 %v270, %v271
    %v273 = vrot.slane %v272, 1
    %v274 = vadd.f32 %v272, %v273
    %v275 = vld [vmem:[%s4 + $0x3] sm:$0x1]
    %v276 = vmul.f32 %v171, %v275
    %v277 = vadd.f32 %v274, %v276
    %278 = vst.msk [vmem:[%s12 + $0x3] sm:$0x1] %vm172, %v277
    %v279 = vld [vmem:[#allocation2 + $0x10] sm:$0xf]
    %v280 = vmul.f32 %v190, %v279
    %v281 = vsel %vm116, %v280, 0.0
    %v282 = vrot.slane %v281, 4
    %v283 = vadd.f32 %v281, %v282
    %v284 = vrot.slane %v283, 2
    %v285 = vadd.f32 %v283, %v284
    %v286 = vrot.slane %v285, 1
    %v287 = vadd.f32 %v285, %v286
    %288 = vst.msk [vmem:[%s7 + $0x4] sm:$0x1] %vm172, %v287
    %v289 = vmul.f32 %v170, %v279
    %v290 = vsel %vm116, %v289, 0.0
    %v291 = vrot.slane %v290, 4
    %v292 = vadd.f32 %v290, %v291
    %v293 = vrot.slane %v292, 2
    %v294 = vadd.f32 %v292, %v293
    %v295 = vrot.slane %v294, 1
    %v296 = vadd.f32 %v294, %v295
    %v297 = vld [vmem:[%s4 + $0x4] sm:$0x1]
    %v298 = vmul.f32 %v171, %v297
    %v299 = vadd.f32 %v296, %v298
    %300 = vst.msk [vmem:[%s12 + $0x4] sm:$0x1] %vm172, %v299
    %v301 = vld [vmem:[#allocation2 + $0x14] sm:$0xf]
    %v302 = vmul.f32 %v190, %v301
    %v303 = vsel %vm116, %v302, 0.0
    %v304 = vrot.slane %v303, 4
    %v305 = vadd.f32 %v303, %v304
    %v306 = vrot.slane %v305, 2
    %v307 = vadd.f32 %v305, %v306
    %v308 = vrot.slane %v307, 1
    %v309 = vadd.f32 %v307, %v308
    %310 = vst.msk [vmem:[%s7 + $0x5] sm:$0x1] %vm172, %v309
    %v311 = vmul.f32 %v170, %v301
    %v312 = vsel %vm116, %v311, 0.0
    %v313 = vrot.slane %v312, 4
    %v314 = vadd.f32 %v312, %v313
    %v315 = vrot.slane %v314, 2
    %v316 = vadd.f32 %v314, %v315
    %v317 = vrot.slane %v316, 1
    %v318 = vadd.f32 %v316, %v317
    %v319 = vld [vmem:[%s4 + $0x5] sm:$0x1]
    %v320 = vmul.f32 %v171, %v319
    %v321 = vadd.f32 %v318, %v320
    %322 = vst.msk [vmem:[%s12 + $0x5] sm:$0x1] %vm172, %v321
    %v323 = vmul.f32 %v190, %v49
    %v324 = vsel %vm116, %v323, 0.0
    %v325 = vrot.slane %v324, 4
    %v326 = vadd.f32 %v324, %v325
    %v327 = vrot.slane %v326, 2
    %v328 = vadd.f32 %v326, %v327
    %v329 = vrot.slane %v328, 1
    %v330 = vadd.f32 %v328, %v329
    %331 = vst.msk [vmem:[#allocation8] sm:$0x1] %vm172, %v330
    %v332 = vmul.f32 %v170, %v49
    %v333 = vsel %vm116, %v332, 0.0
    %v334 = vrot.slane %v333, 4
    %v335 = vadd.f32 %v333, %v334
    %v336 = vrot.slane %v335, 2
    %v337 = vadd.f32 %v335, %v336
    %v338 = vrot.slane %v337, 1
    %v339 = vadd.f32 %v337, %v338
    %340 = vst.msk [vmem:[#allocation11] sm:$0x1] %vm172, %v339
    %vm341 = vcmp.gt.f32.partialorder %v115, -4.60516
    %v342 = vsel %vm341, 1, 0
    %v343 = vcvt.s32.f32 %v342
    %344 = vst.msk [vmem:[#allocation6] sm:$0xf] %vm116, %v343
    %345 = vst.msk [vmem:[#allocation9] sm:$0x1] %vm172, %v187
    %346 = vst.msk [vmem:[#allocation12] sm:$0xf] %vm116, %v170
    %347 = vst.msk [vmem:[%s10] sm:$0xf] %vm116, %v115
    %348 = vst.msk [vmem:[%s10 + $0x4] sm:$0x1] %vm172, -4.60516
    %v349 = vsub.f32 %v115, %v141
    %350 = vst.msk [vmem:[%s11] sm:$0xf] %vm116, %v349
    %v351 = vsub.f32 -4.60516, %v141
    %352 = vst.msk [vmem:[%s11 + $0x4] sm:$0x1] %vm172, %v351
    // Predicated region
    $region26: #{tpu_custom_call.1} parent=1 // pred_check
      _
    $region27: #{tpu_custom_call.1} parent=1 // pred_check_branch
      %354 = sbr.rel (0) target = $region29
    $region28: #{tpu_custom_call.1} parent=1 // pred_region
      %s356 = ssub.s32 16, 16
      %357 = vsyncadd [#allocation4], %s356
      %s359 = sshll.u32 [#allocation5], 4
      %s360 = int_to_ptr.vmem [resolvable:$true] %s359
      %362 = dma.vmem_to_hbm [thread:$0]  %s360, 16, %s5, [#allocation4]
    $region29: #{tpu_custom_call.1} parent=1 // pred_fallthru
      _
    // Predicated region
    $region30: #{tpu_custom_call.1} parent=1 // pred_check
      _
    $region31: #{tpu_custom_call.1} parent=1 // pred_check_branch
      %364 = sbr.rel (0) target = $region33
    $region32: #{tpu_custom_call.1} parent=1 // pred_region
      %s366 = ssub.s32 64, 64
      %367 = vsyncadd [#allocation7], %s366
      %s369 = sshll.u32 [#allocation6], 4
      %s370 = int_to_ptr.vmem [resolvable:$true] %s369
      %372 = dma.vmem_to_hbm [thread:$0]  %s370, 64, %s6, [#allocation7]
    $region33: #{tpu_custom_call.1} parent=1 // pred_fallthru
      _
    // Predicated region
    $region34: #{tpu_custom_call.1} parent=1 // pred_check
      _
    $region35: #{tpu_custom_call.1} parent=1 // pred_check_branch
      %374 = sbr.rel (0) target = $region37
    $region36: #{tpu_custom_call.1} parent=1 // pred_region
      _
    $region37: #{tpu_custom_call.1} parent=1 // pred_fallthru
      _
    // Predicated region
    $region38: #{tpu_custom_call.1} parent=1 // pred_check
      _
    $region39: #{tpu_custom_call.1} parent=1 // pred_check_branch
      %376 = sbr.rel (0) target = $region41
    $region40: #{tpu_custom_call.1} parent=1 // pred_region
      %s378 = ssub.s32 16, 16
      %379 = vsyncadd [#allocation7], %s378
      %s381 = sshll.u32 [#allocation8], 4
      %s382 = int_to_ptr.vmem [resolvable:$true] %s381
      %384 = dma.vmem_to_hbm [thread:$0]  %s382, 16, %s8, [#allocation7]
    $region41: #{tpu_custom_call.1} parent=1 // pred_fallthru
      _
    // Predicated region
    $region42: #{tpu_custom_call.1} parent=1 // pred_check
      _
    $region43: #{tpu_custom_call.1} parent=1 // pred_check_branch
      %386 = sbr.rel (0) target = $region45
    $region44: #{tpu_custom_call.1} parent=1 // pred_region
      %s388 = ssub.s32 16, 16
      %389 = vsyncadd [#allocation10], %s388
      %s391 = sshll.u32 [#allocation9], 4
      %s392 = int_to_ptr.vmem [resolvable:$true] %s391
      %394 = dma.vmem_to_hbm [thread:$0]  %s392, 16, %s9, [#allocation10]
    $region45: #{tpu_custom_call.1} parent=1 // pred_fallthru
      _
    // Predicated region
    $region46: #{tpu_custom_call.1} parent=1 // pred_check
      _
    $region47: #{tpu_custom_call.1} parent=1 // pred_check_branch
      %396 = sbr.rel (0) target = $region49
    $region48: #{tpu_custom_call.1} parent=1 // pred_region
      _
    $region49: #{tpu_custom_call.1} parent=1 // pred_fallthru
      _
    // Predicated region
    $region50: #{tpu_custom_call.1} parent=1 // pred_check
      _
    $region51: #{tpu_custom_call.1} parent=1 // pred_check_branch
      %398 = sbr.rel (0) target = $region53
    $region52: #{tpu_custom_call.1} parent=1 // pred_region
      _
    $region53: #{tpu_custom_call.1} parent=1 // pred_fallthru
      _
    // Predicated region
    $region54: #{tpu_custom_call.1} parent=1 // pred_check
      _
    $region55: #{tpu_custom_call.1} parent=1 // pred_check_branch
      %400 = sbr.rel (0) target = $region57
    $region56: #{tpu_custom_call.1} parent=1 // pred_region
      _
    $region57: #{tpu_custom_call.1} parent=1 // pred_fallthru
      _
    // Predicated region
    $region58: #{tpu_custom_call.1} parent=1 // pred_check
      _
    $region59: #{tpu_custom_call.1} parent=1 // pred_check_branch
      %402 = sbr.rel (0) target = $region61
    $region60: #{tpu_custom_call.1} parent=1 // pred_region
      %s404 = ssub.s32 16, 16
      %405 = vsyncadd [#allocation10], %s404
      %s407 = sshll.u32 [#allocation11], 4
      %s408 = int_to_ptr.vmem [resolvable:$true] %s407
      %410 = dma.vmem_to_hbm [thread:$0]  %s408, 16, %s13, [#allocation10]
    $region61: #{tpu_custom_call.1} parent=1 // pred_fallthru
      _
    // Predicated region
    $region62: #{tpu_custom_call.1} parent=1 // pred_check
      _
    $region63: #{tpu_custom_call.1} parent=1 // pred_check_branch
      %412 = sbr.rel (0) target = $region65
    $region64: #{tpu_custom_call.1} parent=1 // pred_region
      %s414 = ssub.s32 64, 64
      %415 = vsyncadd [#allocation13], %s414
      %s417 = sshll.u32 [#allocation12], 4
      %s418 = int_to_ptr.vmem [resolvable:$true] %s417
      %420 = dma.vmem_to_hbm [thread:$0]  %s418, 64, %s14, [#allocation13]
    $region65: #{tpu_custom_call.1} parent=1 // pred_fallthru
      _
    // Predicated region
    $region66: #{tpu_custom_call.1} parent=1 // pred_check
      _
    $region67: #{tpu_custom_call.1} parent=1 // pred_check_branch
      %422 = sbr.rel (0) target = $region69
    $region68: #{tpu_custom_call.1} parent=1 // pred_region
      %423 = dma.done [#allocation4], 16
    $region69: #{tpu_custom_call.1} parent=1 // pred_fallthru
      _
    // Predicated region
    $region70: #{tpu_custom_call.1} parent=1 // pred_check
      _
    $region71: #{tpu_custom_call.1} parent=1 // pred_check_branch
      %425 = sbr.rel (0) target = $region73
    $region72: #{tpu_custom_call.1} parent=1 // pred_region
      %426 = dma.done [#allocation7], 64
    $region73: #{tpu_custom_call.1} parent=1 // pred_fallthru
      _
    // Predicated region
    $region74: #{tpu_custom_call.1} parent=1 // pred_check
      _
    $region75: #{tpu_custom_call.1} parent=1 // pred_check_branch
      %428 = sbr.rel (0) target = $region77
    $region76: #{tpu_custom_call.1} parent=1 // pred_region
      _
    $region77: #{tpu_custom_call.1} parent=1 // pred_fallthru
      _
    // Predicated region
    $region78: #{tpu_custom_call.1} parent=1 // pred_check
      _
    $region79: #{tpu_custom_call.1} parent=1 // pred_check_branch
      %430 = sbr.rel (0) target = $region81
    $region80: #{tpu_custom_call.1} parent=1 // pred_region
      %431 = dma.done [#allocation7], 16
    $region81: #{tpu_custom_call.1} parent=1 // pred_fallthru
      _
    // Predicated region
    $region82: #{tpu_custom_call.1} parent=1 // pred_check
      _
    $region83: #{tpu_custom_call.1} parent=1 // pred_check_branch
      %433 = sbr.rel (0) target = $region85
    $region84: #{tpu_custom_call.1} parent=1 // pred_region
      %434 = dma.done [#allocation10], 16
    $region85: #{tpu_custom_call.1} parent=1 // pred_fallthru
      _
    // Predicated region
    $region86: #{tpu_custom_call.1} parent=1 // pred_check
      _
    $region87: #{tpu_custom_call.1} parent=1 // pred_check_branch
      %436 = sbr.rel (0) target = $region89
    $region88: #{tpu_custom_call.1} parent=1 // pred_region
      _
    $region89: #{tpu_custom_call.1} parent=1 // pred_fallthru
      _
    // Predicated region
    $region90: #{tpu_custom_call.1} parent=1 // pred_check
      _
    $region91: #{tpu_custom_call.1} parent=1 // pred_check_branch
      %438 = sbr.rel (0) target = $region93
    $region92: #{tpu_custom_call.1} parent=1 // pred_region
      _
    $region93: #{tpu_custom_call.1} parent=1 // pred_fallthru
      _
    // Predicated region
    $region94: #{tpu_custom_call.1} parent=1 // pred_check
      _
    $region95: #{tpu_custom_call.1} parent=1 // pred_check_branch
      %440 = sbr.rel (0) target = $region97
    $region96: #{tpu_custom_call.1} parent=1 // pred_region
      _
    $region97: #{tpu_custom_call.1} parent=1 // pred_fallthru
      _
    // Predicated region
    $region98: #{tpu_custom_call.1} parent=1 // pred_check
      _
    $region99: #{tpu_custom_call.1} parent=1 // pred_check_branch
      %442 = sbr.rel (0) target = $region101
    $region100: #{tpu_custom_call.1} parent=1 // pred_region
      %443 = dma.done [#allocation10], 16
    $region101: #{tpu_custom_call.1} parent=1 // pred_fallthru
      _
    // Predicated region
    $region102: #{tpu_custom_call.1} parent=1 // pred_check
      _
    $region103: #{tpu_custom_call.1} parent=1 // pred_check_branch
      %445 = sbr.rel (0) target = $region105
    $region104: #{tpu_custom_call.1} parent=1 // pred_region
      %446 = dma.done [#allocation13], 64
    $region105: #{tpu_custom_call.1} parent=1 // pred_fallthru
      _
    %447 = vsyncpa [#allocation3], 1
    %448 = vsyncpa [#allocation4], 1
    %449 = vsyncpa [#allocation7], 1
    %450 = vsyncpa [#allocation10], 1
    %451 = vsyncpa [#allocation13], 1

</llo_original>
